<compile_context>
chip_gen: v6e
topology: v6e:2x2x1
jax: 0.10.0
libtpu: 0.0.40
codegen_flags: <defaults>
</compile_context>

<pallas_src>
import functools

import jax
import jax.numpy as jnp
from jax.experimental import pallas as pl
from jax.experimental.pallas import tpu as pltpu


# ---------------------------------------------------------------------------
# Prologue kernel:  = D^-1/2 * A * D^-1/2, cast once to the MXU compute dtype.
# ---------------------------------------------------------------------------
def _normalize_adj_kernel(adj_ref, drow_ref, dcol_ref, out_ref):
    out_ref[...] = (adj_ref[...] * drow_ref[...] * dcol_ref[...]).astype(out_ref.dtype)


def _normalize_adj(adj, d_invsqrt, *, out_dtype, tm, tc):
    n = adj.shape[0]
    d_row = d_invsqrt                    # (n, 1)
    d_col = d_invsqrt.reshape(1, n)      # (1, n)
    return pl.pallas_call(
        _normalize_adj_kernel,
        out_shape=jax.ShapeDtypeStruct((n, n), out_dtype),
        grid_spec=pltpu.PrefetchScalarGridSpec(
            num_scalar_prefetch=0,
            grid=(n // tm, n // tc),
            in_specs=[
                pl.BlockSpec((tm, tc), lambda i, j: (i, j)),
                pl.BlockSpec((tm, 1), lambda i, j: (i, 0)),
                pl.BlockSpec((1, tc), lambda i, j: (0, j)),
            ],
            out_specs=pl.BlockSpec((tm, tc), lambda i, j: (i, j)),
        ),
        compiler_params=pltpu.CompilerParams(
            dimension_semantics=("parallel", "parallel"),
            vmem_limit_bytes=48 * 1024 * 1024,
        ),
    )(adj, d_row, d_col)


# ---------------------------------------------------------------------------
# Fused kernel: all K-1 polynomial steps in one pallas_call.
#   grid = (K-1, N//tm, N//tk); feat ping-pongs inside a (2, N, F) VMEM scratch,
#   h is the resident output block, only  tiles stream from HBM.
# ---------------------------------------------------------------------------
def _poly_fused_kernel(ahat_ref, feat_ref, h_ref, feat_buf, acc_ref, *, theta, tm, tk):
    s = pl.program_id(0)               # polynomial step: produces feat_{s+1}
    i = pl.program_id(1)               # output row tile
    k = pl.program_id(2)               # contraction tile (innermost)
    nk = pl.num_programs(2)

    # One-time init at the very first grid point: stage feat into the ping-pong
    # scratch and start the polynomial accumulator h = theta[0] * feat.
    @pl.when((s == 0) & (i == 0) & (k == 0))
    def _():
        f0 = feat_ref[...].astype(jnp.float32)
        feat_buf[0, :, :] = f0
        h_ref[...] = (theta[0] * f0).astype(h_ref.dtype)

    @pl.when(k == 0)
    def _():
        acc_ref[...] = jnp.zeros_like(acc_ref)

    src = s % 2
    feat_src = feat_buf.at[src]
    feat_dst = feat_buf.at[1 - src]

    k_off = pl.multiple_of(k * tk, tk)
    feat_k = feat_src[pl.ds(k_off, tk), :].astype(ahat_ref.dtype)   # bf16 for the MXU
    acc_ref[...] += jnp.dot(ahat_ref[...], feat_k,
                            preferred_element_type=jnp.float32)

    @pl.when(k == nk - 1)
    def _():
        i_off = pl.multiple_of(i * tm, tm)
        rows = pl.ds(i_off, tm)
        new_feat = feat_src[rows, :] - acc_ref[...]
        feat_dst[rows, :] = new_feat
        # theta[s + 1] from the static coefficient list (tiny scalar select chain).
        theta_k = jnp.float32(theta[1])
        for idx in range(2, len(theta)):
            theta_k = jnp.where(s == idx - 1, jnp.float32(theta[idx]), theta_k)
        h_ref[rows, :] = h_ref[rows, :] + (theta_k * new_feat).astype(h_ref.dtype)


def _poly_conv_fused(ahat, feat, theta, *, tm, tk):
    n, f = feat.shape
    nsteps = len(theta) - 1
    kernel = functools.partial(_poly_fused_kernel,
                               theta=tuple(float(t) for t in theta), tm=tm, tk=tk)
    cost = pl.CostEstimate(
        flops=2 * nsteps * n * n * f + 4 * nsteps * n * f,
        transcendentals=0,
        bytes_accessed=nsteps * n * n * ahat.dtype.itemsize + 2 * n * f * 4,
    )
    return pl.pallas_call(
        kernel,
        out_shape=jax.ShapeDtypeStruct((n, f), feat.dtype),
        grid_spec=pltpu.PrefetchScalarGridSpec(
            num_scalar_prefetch=0,
            grid=(nsteps, n // tm, n // tk),
            in_specs=[
                pl.BlockSpec((tm, tk), lambda s, i, k: (i, k)),   #  tile (bf16)
                pl.BlockSpec((n, f), lambda s, i, k: (0, 0)),     # feat, resident
            ],
            out_specs=pl.BlockSpec((n, f), lambda s, i, k: (0, 0)),  # h, resident
            scratch_shapes=[
                pltpu.VMEM((2, n, f), jnp.float32),   # feat ping-pong across steps
                pltpu.VMEM((tm, f), jnp.float32),     # matmul accumulator
            ],
        ),
        compiler_params=pltpu.CompilerParams(
            # Resident feat/h state ties all axes to one core -> "arbitrary".
            dimension_semantics=("arbitrary", "arbitrary", "arbitrary"),
            vmem_limit_bytes=48 * 1024 * 1024,
        ),
        cost_estimate=cost,
    )(ahat, feat)


# ---------------------------------------------------------------------------
# Fallback kernel (large N): one Laplacian step per pallas_call.
#   acc      =  [i, :] @ feat                (accumulated over k tiles)
#   new_feat = feat[i] - acc
#   h_out[i] = h_scale * h_in[i] + theta_k * new_feat
# ---------------------------------------------------------------------------
def _poly_step_kernel(ahat_ref, featk_ref, feati_ref, hin_ref,
                      feat_out_ref, h_out_ref, acc_ref, *, theta_k, h_scale):
    k = pl.program_id(1)

    @pl.when(k == 0)
    def _():
        acc_ref[...] = jnp.zeros_like(acc_ref)

    acc_ref[...] += jnp.dot(ahat_ref[...],
                            featk_ref[...].astype(ahat_ref.dtype),
                            preferred_element_type=jnp.float32)

    @pl.when(k == pl.num_programs(1) - 1)
    def _():
        new_feat = feati_ref[...].astype(jnp.float32) - acc_ref[...]
        feat_out_ref[...] = new_feat.astype(feat_out_ref.dtype)
        h_out_ref[...] = (h_scale * hin_ref[...].astype(jnp.float32)
                          + theta_k * new_feat).astype(h_out_ref.dtype)


def _poly_step(ahat, feat, h_in, *, theta_k, h_scale, tm, tk):
    n, f = feat.shape
    kernel = functools.partial(_poly_step_kernel,
                               theta_k=float(theta_k), h_scale=float(h_scale))
    cost = pl.CostEstimate(
        flops=2 * n * n * f + 6 * n * f,
        transcendentals=0,
        bytes_accessed=(n * n * ahat.dtype.itemsize      # adjacency stream
                        + (n // tm) * n * f * 4          # re-streamed contraction feat
                        + 4 * n * f * 4),                # feat_i, h_in, feat_out, h_out
    )
    feat_out, h_out = pl.pallas_call(
        kernel,
        out_shape=(jax.ShapeDtypeStruct((n, f), feat.dtype),
                   jax.ShapeDtypeStruct((n, f), feat.dtype)),
        grid_spec=pltpu.PrefetchScalarGridSpec(
            num_scalar_prefetch=0,
            grid=(n // tm, n // tk),
            in_specs=[
                pl.BlockSpec((tm, tk), lambda i, k: (i, k)),  #  tile (bf16)
                pl.BlockSpec((tk, f), lambda i, k: (k, 0)),   # feat, contraction rows
                pl.BlockSpec((tm, f), lambda i, k: (i, 0)),   # feat, produced rows
                pl.BlockSpec((tm, f), lambda i, k: (i, 0)),   # running polynomial h
            ],
            out_specs=[
                pl.BlockSpec((tm, f), lambda i, k: (i, 0)),   # new feat
                pl.BlockSpec((tm, f), lambda i, k: (i, 0)),   # updated h
            ],
            scratch_shapes=[pltpu.VMEM((tm, f), jnp.float32)],
        ),
        compiler_params=pltpu.CompilerParams(
            dimension_semantics=("parallel", "arbitrary"),
            vmem_limit_bytes=48 * 1024 * 1024,
        ),
        cost_estimate=cost,
    )(ahat, feat, feat, h_in)
    return feat_out, h_out


# ---------------------------------------------------------------------------
# Tile selection: multiples of 128 only (or the full axis), per the (8,128) rule.
# ---------------------------------------------------------------------------
def _pick_tile(n, cap, *, min_blocks=1):
    for cand in (1024, 512, 384, 256, 128):
        if cand <= cap and n % cand == 0 and n // cand >= min_blocks:
            return cand
    return n   # full axis: always a legal block extent


# ---------------------------------------------------------------------------
# PolyConv forward.
#   adj:        (N, N) dense adjacency, adj[v, u] = 1 if edge u -> v
#   in_degrees: (N,)   in-degree per node (row-sums of adj)
#   feat:       (N, F) node features
#   theta:      list of K polynomial coefficients (static Python floats)
# ---------------------------------------------------------------------------
def poly_conv(adj, in_degrees, feat, theta, *, compute_dtype=jnp.bfloat16,
              fuse_steps=None):
    n, f = feat.shape
    theta = [float(t) for t in theta]
    if len(theta) == 1:
        # Degenerate polynomial: pure scalar scaling, no graph propagation.
        return theta[0] * feat

    d_invsqrt = jnp.power(jnp.maximum(in_degrees.astype(jnp.float32), 1.0),
                          -0.5).reshape(n, 1)

    # Prologue: normalized adjacency, computed once for all K-1 steps.
    ahat = _normalize_adj(adj.astype(jnp.float32), d_invsqrt,
                          out_dtype=compute_dtype,
                          tm=_pick_tile(n, 512), tc=_pick_tile(n, 512))

    if fuse_steps is None:
        # feat ping-pong (2x) + resident feat input (~2x) + resident h (~2x), f32.
        resident_bytes = 6 * n * f * 4
        fuse_steps = resident_bytes <= 24 * 1024 * 1024

    if fuse_steps:
        tm = _pick_tile(n, 512)
        tk = _pick_tile(n, 512)
        return _poly_conv_fused(ahat, feat, theta, tm=tm, tk=tk)

    # Fallback: chained per-step calls; keep >= 2 row tiles for v7x megacore.
    tm = _pick_tile(n, 512, min_blocks=2)
    tk = _pick_tile(n, 512)
    h = feat
    for k in range(1, len(theta)):
        feat, h = _poly_step(ahat, feat, h,
                             theta_k=theta[k],
                             h_scale=theta[0] if k == 1 else 1.0,
                             tm=tm, tk=tk)
    return h


# Pure-JAX reference (exact f32 semantics of the PyTorch/DGL module).
def poly_conv_reference(adj, in_degrees, feat, theta):
    d = jnp.power(jnp.maximum(in_degrees.astype(jnp.float32), 1.0), -0.5)[:, None]
    h = theta[0] * feat
    for k in range(1, len(theta)):
        feat = feat - d * (adj @ (feat * d))
        h = h + theta[k] * feat
    return h


if __name__ == "__main__":
    # Small, lane-dense, deterministic problem: N nodes, F feature channels, K=3.
    N, F = 256, 128
    THETA = [0.6, 0.3, 0.1]

    key = jax.random.PRNGKey(0)
    k_feat, k_adj = jax.random.split(key)

    feat = jax.random.normal(k_feat, (N, F), dtype=jnp.float32)

    # Random undirected graph: symmetric 0/1 dense adjacency, no self loops.
    adj = jax.random.bernoulli(k_adj, 0.05, (N, N)).astype(jnp.float32)
    adj = jnp.maximum(adj, adj.T) * (1.0 - jnp.eye(N, dtype=jnp.float32))
    in_degrees = adj.sum(axis=1)   # copy_u/sum aggregation => in-degree = row sum

    ref = jax.block_until_ready(poly_conv_reference(adj, in_degrees, feat, THETA))

    # 1) Fused single-kernel path, bf16 MXU operands (default).  bf16 has ~3
    #    significant digits, so tolerance vs. the exact f32 reference is relaxed.
    out_fused = jax.block_until_ready(poly_conv(adj, in_degrees, feat, THETA))
    assert out_fused.shape == (N, F)
    assert jnp.allclose(out_fused, ref, rtol=5e-2, atol=5e-2), \
        float(jnp.max(jnp.abs(out_fused - ref)))

    # 2) Fused path with f32 operands: matches the exact reference tightly.
    out_f32 = jax.block_until_ready(
        poly_conv(adj, in_degrees, feat, THETA, compute_dtype=jnp.float32))
    assert jnp.allclose(out_f32, ref, rtol=1e-4, atol=1e-4), \
        float(jnp.max(jnp.abs(out_f32 - ref)))

    # 3) Chained per-step fallback path (used when feat does not fit VMEM).
    out_step = jax.block_until_ready(
        poly_conv(adj, in_degrees, feat, THETA, fuse_steps=False))
    assert jnp.allclose(out_step, ref, rtol=5e-2, atol=5e-2), \
        float(jnp.max(jnp.abs(out_step - ref)))

    print("KERNEL_OK")
</pallas_src>

<mosaic_0001>
module attributes {stable_mosaic.version = 11 : i64} {
  func.func @_normalize_adj_kernel(%arg0: i32, %arg1: i32, %arg2: memref<256x256xf32, #tpu.memory_space<vmem>>, %arg3: memref<256x1xf32, #tpu.memory_space<vmem>>, %arg4: memref<1x256xf32, #tpu.memory_space<vmem>>, %arg5: memref<256x256xbf16, #tpu.memory_space<vmem>>) attributes {dimension_semantics = [#tpu.dimension_semantics<parallel>, #tpu.dimension_semantics<parallel>], iteration_bounds = array<i64: 1, 1>, scalar_prefetch = 0 : i64, scratch_operands = 0 : i64, tpu.core_type = #tpu.core_type<tc>, window_params = [{transform_indices = @transform_0, window_bounds = array<i64: 256, 256>}, {transform_indices = @transform_1, window_bounds = array<i64: 256, 1>}, {transform_indices = @transform_2, window_bounds = array<i64: 1, 256>}, {transform_indices = @transform_3, window_bounds = array<i64: 256, 256>}]} {
    %c0 = arith.constant 0 : index
    %c0_0 = arith.constant 0 : index
    %0 = vector.load %arg2[%c0, %c0_0] : memref<256x256xf32, #tpu.memory_space<vmem>>, vector<256x256xf32>
    %c0_1 = arith.constant 0 : index
    %c0_2 = arith.constant 0 : index
    %1 = vector.load %arg3[%c0_1, %c0_2] : memref<256x1xf32, #tpu.memory_space<vmem>>, vector<256x1xf32>
    %2 = vector.broadcast %1 : vector<256x1xf32> to vector<256x256xf32>
    %3 = arith.mulf %0, %2 : vector<256x256xf32>
    %c0_3 = arith.constant 0 : index
    %c0_4 = arith.constant 0 : index
    %4 = vector.load %arg4[%c0_3, %c0_4] : memref<1x256xf32, #tpu.memory_space<vmem>>, vector<1x256xf32>
    %5 = vector.broadcast %4 : vector<1x256xf32> to vector<256x256xf32>
    %6 = arith.mulf %3, %5 : vector<256x256xf32>
    %7 = arith.truncf %6 : vector<256x256xf32> to vector<256x256xbf16>
    %c0_5 = arith.constant 0 : index
    %c0_6 = arith.constant 0 : index
    %8 = vector.load %arg5[%c0_5, %c0_6] : memref<256x256xbf16, #tpu.memory_space<vmem>>, vector<256x256xbf16>
    tpu.vector_store %arg5[%c0_5, %c0_6], %7 {strides = array<i32>} : memref<256x256xbf16, #tpu.memory_space<vmem>>, vector<256x256xbf16>,
    return
  }
  func.func @transform_0(%arg0: i32, %arg1: i32) -> (i32, i32) {
    %c0_i32 = arith.constant 0 : i32
    return %arg0, %arg1 : i32, i32
  }
  func.func @transform_1(%arg0: i32, %arg1: i32) -> (i32, i32) {
    %c0_i32 = arith.constant 0 : i32
    %c0_i32_0 = arith.constant 0 : i32
    return %arg0, %c0_i32 : i32, i32
  }
  func.func @transform_2(%arg0: i32, %arg1: i32) -> (i32, i32) {
    %c0_i32 = arith.constant 0 : i32
    %c0_i32_0 = arith.constant 0 : i32
    return %c0_i32, %arg1 : i32, i32
  }
  func.func @transform_3(%arg0: i32, %arg1: i32) -> (i32, i32) {
    %c0_i32 = arith.constant 0 : i32
    return %arg0, %arg1 : i32, i32
  }
}

</mosaic_0001>

<llo_original>
// kernel: tpu_custom_call.1
$region0: #{tpu_custom_call.1}
  #allocation0 [shape = 'u32[]', space=smem, size = 0x4, offset = 0x4, fixed_abs, tag = 'smem constant byte address 0x4 - core index']
  #allocation1 [shape = 'u32[144,128]{1,0:T(1,128)}', space=vmem, size = 0x12000, scoped, tag = 'internal scratch']
  %s0 = inlined_call_operand.hbm [shape: f32[256,256], index: 0, kind: input, shape index: {}]
  %s1 = inlined_call_operand.vmem [shape: f32[256,1], index: 1, kind: input, shape index: {}]
  %s2 = inlined_call_operand.vmem [shape: f32[1,256], index: 2, kind: input, shape index: {}]
  %s3 = inlined_call_operand.hbm [shape: bf16[256,256], index: 3, kind: output, shape index: {}]
  %s4 = sld [smem:[#allocation0]]
  $region26: #{tpu_custom_call.1} parent=0
    _
  %s6 = ssub.s32 1, %s4
  %s7 = scalar_select 0, %s6, %s4
  $region1: #{tpu_custom_call.1} parent=0
    #allocation2 [shape = 'u8[262144]{0}', space=vmem, size = 0x40000, scoped, tag = 'input window, operand 0, single buffered']
    #allocation3 [shape = 's32[1]{0}', space=sflag, size = 0x4, scoped, tag = 'scoped memory for tpu_custom_call.1']
    #allocation4 [shape = 's32[1]{0}', space=sflag, size = 0x4, scoped, tag = 'scoped memory for tpu_custom_call.1']
    #allocation5 [shape = 'u8[131072]{0}', space=vmem, size = 0x20000, scoped, tag = 'output window, operand 0, single buffered']
    %8 = vsyncpa [#allocation3], 0
    %9 = vsyncpa [#allocation4], 0
    // Predicated region
    $region2: #{tpu_custom_call.1} parent=1 // pred_check
      _
    $region3: #{tpu_custom_call.1} parent=1 // pred_check_branch
      %11 = sbr.rel (0) target = $region5
    $region4: #{tpu_custom_call.1} parent=1 // pred_region
      %s13 = ssub.s32 8192, 8192
      %14 = vsyncadd [#allocation3], %s13
      %s15 = sshll.u32 [#allocation2], 4
      %s16 = int_to_ptr.vmem [resolvable:$true] %s15
      %21 = dma.hbm_to_vmem [thread:$0]  %s0, 8192, %s16, [#allocation3], 256, 256, 16
    $region5: #{tpu_custom_call.1} parent=1 // pred_fallthru
      _
    // Predicated region
    $region6: #{tpu_custom_call.1} parent=1 // pred_check
      _
    $region7: #{tpu_custom_call.1} parent=1 // pred_check_branch
      %23 = sbr.rel (0) target = $region9
    $region8: #{tpu_custom_call.1} parent=1 // pred_region
      _
    $region9: #{tpu_custom_call.1} parent=1 // pred_fallthru
      _
    // Predicated region
    $region10: #{tpu_custom_call.1} parent=1 // pred_check
      _
    $region11: #{tpu_custom_call.1} parent=1 // pred_check_branch
      %25 = sbr.rel (0) target = $region13
    $region12: #{tpu_custom_call.1} parent=1 // pred_region
      _
    $region13: #{tpu_custom_call.1} parent=1 // pred_fallthru
      _
    // Predicated region
    $region14: #{tpu_custom_call.1} parent=1 // pred_check
      _
    $region15: #{tpu_custom_call.1} parent=1 // pred_check_branch
      %27 = sbr.rel (0) target = $region17
    $region16: #{tpu_custom_call.1} parent=1 // pred_region
      %28 = dma.done [#allocation3], 8192
    $region17: #{tpu_custom_call.1} parent=1 // pred_fallthru
      _
    %v29 = vld [vmem:[#allocation2] sm:$0xff]
    %v30 = vld [vmem:[#allocation2 + $0x8] sm:$0xff]
    %v31 = vld [vmem:[#allocation2 + $0x10] sm:$0xff]
    %v32 = vld [vmem:[#allocation2 + $0x18] sm:$0xff]
    %v33 = vld [vmem:[#allocation2 + $0x20] sm:$0xff]
    %v34 = vld [vmem:[#allocation2 + $0x28] sm:$0xff]
    %v35 = vld [vmem:[#allocation2 + $0x30] sm:$0xff]
    %v36 = vld [vmem:[#allocation2 + $0x38] sm:$0xff]
    %v37 = vld [vmem:[#allocation2 + $0x40] sm:$0xff]
    %v38 = vld [vmem:[#allocation2 + $0x48] sm:$0xff]
    %v39 = vld [vmem:[#allocation2 + $0x50] sm:$0xff]
    %v40 = vld [vmem:[#allocation2 + $0x58] sm:$0xff]
    %v41 = vld [vmem:[#allocation2 + $0x60] sm:$0xff]
    %v42 = vld [vmem:[#allocation2 + $0x68] sm:$0xff]
    %v43 = vld [vmem:[#allocation2 + $0x70] sm:$0xff]
    %v44 = vld [vmem:[#allocation2 + $0x78] sm:$0xff]
    %v45 = vld [vmem:[#allocation2 + $0x80] sm:$0xff]
    %v46 = vld [vmem:[#allocation2 + $0x88] sm:$0xff]
    %v47 = vld [vmem:[#allocation2 + $0x90] sm:$0xff]
    %v48 = vld [vmem:[#allocation2 + $0x98] sm:$0xff]
    %v49 = vld [vmem:[#allocation2 + $0xa0] sm:$0xff]
    %v50 = vld [vmem:[#allocation2 + $0xa8] sm:$0xff]
    %v51 = vld [vmem:[#allocation2 + $0xb0] sm:$0xff]
    %v52 = vld [vmem:[#allocation2 + $0xb8] sm:$0xff]
    %v53 = vld [vmem:[#allocation2 + $0xc0] sm:$0xff]
    %v54 = vld [vmem:[#allocation2 + $0xc8] sm:$0xff]
    %v55 = vld [vmem:[#allocation2 + $0xd0] sm:$0xff]
    %v56 = vld [vmem:[#allocation2 + $0xd8] sm:$0xff]
    %v57 = vld [vmem:[#allocation2 + $0xe0] sm:$0xff]
    %v58 = vld [vmem:[#allocation2 + $0xe8] sm:$0xff]
    %v59 = vld [vmem:[#allocation2 + $0xf0] sm:$0xff]
    %v60 = vld [vmem:[#allocation2 + $0xf8] sm:$0xff]
    %v61 = vld [vmem:[#allocation2 + $0x100] sm:$0xff]
    %v62 = vld [vmem:[#allocation2 + $0x108] sm:$0xff]
    %v63 = vld [vmem:[#allocation2 + $0x110] sm:$0xff]
    %v64 = vld [vmem:[#allocation2 + $0x118] sm:$0xff]
    %v65 = vld [vmem:[#allocation2 + $0x120] sm:$0xff]
    %v66 = vld [vmem:[#allocation2 + $0x128] sm:$0xff]
    %v67 = vld [vmem:[#allocation2 + $0x130] sm:$0xff]
    %v68 = vld [vmem:[#allocation2 + $0x138] sm:$0xff]
    %v69 = vld [vmem:[#allocation2 + $0x140] sm:$0xff]
    %v70 = vld [vmem:[#allocation2 + $0x148] sm:$0xff]
    %v71 = vld [vmem:[#allocation2 + $0x150] sm:$0xff]
    %v72 = vld [vmem:[#allocation2 + $0x158] sm:$0xff]
    %v73 = vld [vmem:[#allocation2 + $0x160] sm:$0xff]
    %v74 = vld [vmem:[#allocation2 + $0x168] sm:$0xff]
    %v75 = vld [vmem:[#allocation2 + $0x170] sm:$0xff]
    %v76 = vld [vmem:[#allocation2 + $0x178] sm:$0xff]
    %v77 = vld [vmem:[#allocation2 + $0x180] sm:$0xff]
    %v78 = vld [vmem:[#allocation2 + $0x188] sm:$0xff]
    %v79 = vld [vmem:[#allocation2 + $0x190] sm:$0xff]
    %v80 = vld [vmem:[#allocation2 + $0x198] sm:$0xff]
    %v81 = vld [vmem:[#allocation2 + $0x1a0] sm:$0xff]
    %v82 = vld [vmem:[#allocation2 + $0x1a8] sm:$0xff]
    %v83 = vld [vmem:[#allocation2 + $0x1b0] sm:$0xff]
    %v84 = vld [vmem:[#allocation2 + $0x1b8] sm:$0xff]
    %v85 = vld [vmem:[#allocation2 + $0x1c0] sm:$0xff]
    %v86 = vld [vmem:[#allocation2 + $0x1c8] sm:$0xff]
    %v87 = vld [vmem:[#allocation2 + $0x1d0] sm:$0xff]
    %v88 = vld [vmem:[#allocation2 + $0x1d8] sm:$0xff]
    %v89 = vld [vmem:[#allocation2 + $0x1e0] sm:$0xff]
    %v90 = vld [vmem:[#allocation2 + $0x1e8] sm:$0xff]
    %v91 = vld [vmem:[#allocation2 + $0x1f0] sm:$0xff]
    %v92 = vld [vmem:[#allocation2 + $0x1f8] sm:$0xff]
    %v93 = vld [vmem:[%s1] sm:$0xff]
    %v94 = vld [vmem:[%s1 + $0x8] sm:$0xff]
    %v95 = vld [vmem:[%s1 + $0x10] sm:$0xff]
    %v96 = vld [vmem:[%s1 + $0x18] sm:$0xff]
    %v97 = vld [vmem:[%s1 + $0x20] sm:$0xff]
    %v98 = vld [vmem:[%s1 + $0x28] sm:$0xff]
    %v99 = vld [vmem:[%s1 + $0x30] sm:$0xff]
    %v100 = vld [vmem:[%s1 + $0x38] sm:$0xff]
    %v101 = vld [vmem:[%s1 + $0x40] sm:$0xff]
    %v102 = vld [vmem:[%s1 + $0x48] sm:$0xff]
    %v103 = vld [vmem:[%s1 + $0x50] sm:$0xff]
    %v104 = vld [vmem:[%s1 + $0x58] sm:$0xff]
    %v105 = vld [vmem:[%s1 + $0x60] sm:$0xff]
    %v106 = vld [vmem:[%s1 + $0x68] sm:$0xff]
    %v107 = vld [vmem:[%s1 + $0x70] sm:$0xff]
    %v108 = vld [vmem:[%s1 + $0x78] sm:$0xff]
    %v109 = vld [vmem:[%s1 + $0x80] sm:$0xff]
    %v110 = vld [vmem:[%s1 + $0x88] sm:$0xff]
    %v111 = vld [vmem:[%s1 + $0x90] sm:$0xff]
    %v112 = vld [vmem:[%s1 + $0x98] sm:$0xff]
    %v113 = vld [vmem:[%s1 + $0xa0] sm:$0xff]
    %v114 = vld [vmem:[%s1 + $0xa8] sm:$0xff]
    %v115 = vld [vmem:[%s1 + $0xb0] sm:$0xff]
    %v116 = vld [vmem:[%s1 + $0xb8] sm:$0xff]
    %v117 = vld [vmem:[%s1 + $0xc0] sm:$0xff]
    %v118 = vld [vmem:[%s1 + $0xc8] sm:$0xff]
    %v119 = vld [vmem:[%s1 + $0xd0] sm:$0xff]
    %v120 = vld [vmem:[%s1 + $0xd8] sm:$0xff]
    %v121 = vld [vmem:[%s1 + $0xe0] sm:$0xff]
    %v122 = vld [vmem:[%s1 + $0xe8] sm:$0xff]
    %v123 = vld [vmem:[%s1 + $0xf0] sm:$0xff]
    %v124 = vld [vmem:[%s1 + $0xf8] sm:$0xff]
    %126 = vset.pattern.permute.xlu0 0
    %127 = vperm.xlu0 %126, %v93
    %v128 = vpop.permute.xlu0 %127
    %131 = vset.pattern.permute.xlu0 0
    %132 = vperm.xlu0 %131, %v94
    %v133 = vpop.permute.xlu0 %132
    %136 = vset.pattern.permute.xlu0 0
    %137 = vperm.xlu0 %136, %v95
    %v138 = vpop.permute.xlu0 %137
    %141 = vset.pattern.permute.xlu0 0
    %142 = vperm.xlu0 %141, %v96
    %v143 = vpop.permute.xlu0 %142
    %146 = vset.pattern.permute.xlu0 0
    %147 = vperm.xlu0 %146, %v97
    %v148 = vpop.permute.xlu0 %147
    %151 = vset.pattern.permute.xlu0 0
    %152 = vperm.xlu0 %151, %v98
    %v153 = vpop.permute.xlu0 %152
    %156 = vset.pattern.permute.xlu0 0
    %157 = vperm.xlu0 %156, %v99
    %v158 = vpop.permute.xlu0 %157
    %161 = vset.pattern.permute.xlu0 0
    %162 = vperm.xlu0 %161, %v100
    %v163 = vpop.permute.xlu0 %162
    %166 = vset.pattern.permute.xlu0 0
    %167 = vperm.xlu0 %166, %v101
    %v168 = vpop.permute.xlu0 %167
    %171 = vset.pattern.permute.xlu0 0
    %172 = vperm.xlu0 %171, %v102
    %v173 = vpop.permute.xlu0 %172
    %176 = vset.pattern.permute.xlu0 0
    %177 = vperm.xlu0 %176, %v103
    %v178 = vpop.permute.xlu0 %177
    %181 = vset.pattern.permute.xlu0 0
    %182 = vperm.xlu0 %181, %v104
    %v183 = vpop.permute.xlu0 %182
    %186 = vset.pattern.permute.xlu0 0
    %187 = vperm.xlu0 %186, %v105
    %v188 = vpop.permute.xlu0 %187
    %191 = vset.pattern.permute.xlu0 0
    %192 = vperm.xlu0 %191, %v106
    %v193 = vpop.permute.xlu0 %192
    %196 = vset.pattern.permute.xlu0 0
    %197 = vperm.xlu0 %196, %v107
    %v198 = vpop.permute.xlu0 %197
    %201 = vset.pattern.permute.xlu0 0
    %202 = vperm.xlu0 %201, %v108
    %v203 = vpop.permute.xlu0 %202
    %206 = vset.pattern.permute.xlu0 0
    %207 = vperm.xlu0 %206, %v109
    %v208 = vpop.permute.xlu0 %207
    %211 = vset.pattern.permute.xlu0 0
    %212 = vperm.xlu0 %211, %v110
    %v213 = vpop.permute.xlu0 %212
    %216 = vset.pattern.permute.xlu0 0
    %217 = vperm.xlu0 %216, %v111
    %v218 = vpop.permute.xlu0 %217
    %221 = vset.pattern.permute.xlu0 0
    %222 = vperm.xlu0 %221, %v112
    %v223 = vpop.permute.xlu0 %222
    %226 = vset.pattern.permute.xlu0 0
    %227 = vperm.xlu0 %226, %v113
    %v228 = vpop.permute.xlu0 %227
    %231 = vset.pattern.permute.xlu0 0
    %232 = vperm.xlu0 %231, %v114
    %v233 = vpop.permute.xlu0 %232
    %236 = vset.pattern.permute.xlu0 0
    %237 = vperm.xlu0 %236, %v115
    %v238 = vpop.permute.xlu0 %237
    %241 = vset.pattern.permute.xlu0 0
    %242 = vperm.xlu0 %241, %v116
    %v243 = vpop.permute.xlu0 %242
    %246 = vset.pattern.permute.xlu0 0
    %247 = vperm.xlu0 %246, %v117
    %v248 = vpop.permute.xlu0 %247
    %251 = vset.pattern.permute.xlu0 0
    %252 = vperm.xlu0 %251, %v118
    %v253 = vpop.permute.xlu0 %252
    %256 = vset.pattern.permute.xlu0 0
    %257 = vperm.xlu0 %256, %v119
    %v258 = vpop.permute.xlu0 %257
    %261 = vset.pattern.permute.xlu0 0
    %262 = vperm.xlu0 %261, %v120
    %v263 = vpop.permute.xlu0 %262
    %266 = vset.pattern.permute.xlu0 0
    %267 = vperm.xlu0 %266, %v121
    %v268 = vpop.permute.xlu0 %267
    %271 = vset.pattern.permute.xlu0 0
    %272 = vperm.xlu0 %271, %v122
    %v273 = vpop.permute.xlu0 %272
    %276 = vset.pattern.permute.xlu0 0
    %277 = vperm.xlu0 %276, %v123
    %v278 = vpop.permute.xlu0 %277
    %281 = vset.pattern.permute.xlu0 0
    %282 = vperm.xlu0 %281, %v124
    %v283 = vpop.permute.xlu0 %282
    %v285 = vmul.f32 %v29, %v128
    %v286 = vmul.f32 %v30, %v128
    %v287 = vmul.f32 %v31, %v133
    %v288 = vmul.f32 %v32, %v133
    %v289 = vmul.f32 %v33, %v138
    %v290 = vmul.f32 %v34, %v138
    %v291 = vmul.f32 %v35, %v143
    %v292 = vmul.f32 %v36, %v143
    %v293 = vmul.f32 %v37, %v148
    %v294 = vmul.f32 %v38, %v148
    %v295 = vmul.f32 %v39, %v153
    %v296 = vmul.f32 %v40, %v153
    %v297 = vmul.f32 %v41, %v158
    %v298 = vmul.f32 %v42, %v158
    %v299 = vmul.f32 %v43, %v163
    %v300 = vmul.f32 %v44, %v163
    %v301 = vmul.f32 %v45, %v168
    %v302 = vmul.f32 %v46, %v168
    %v303 = vmul.f32 %v47, %v173
    %v304 = vmul.f32 %v48, %v173
    %v305 = vmul.f32 %v49, %v178
    %v306 = vmul.f32 %v50, %v178
    %v307 = vmul.f32 %v51, %v183
    %v308 = vmul.f32 %v52, %v183
    %v309 = vmul.f32 %v53, %v188
    %v310 = vmul.f32 %v54, %v188
    %v311 = vmul.f32 %v55, %v193
    %v312 = vmul.f32 %v56, %v193
    %v313 = vmul.f32 %v57, %v198
    %v314 = vmul.f32 %v58, %v198
    %v315 = vmul.f32 %v59, %v203
    %v316 = vmul.f32 %v60, %v203
    %v317 = vmul.f32 %v61, %v208
    %v318 = vmul.f32 %v62, %v208
    %v319 = vmul.f32 %v63, %v213
    %v320 = vmul.f32 %v64, %v213
    %v321 = vmul.f32 %v65, %v218
    %v322 = vmul.f32 %v66, %v218
    %v323 = vmul.f32 %v67, %v223
    %v324 = vmul.f32 %v68, %v223
    %v325 = vmul.f32 %v69, %v228
    %v326 = vmul.f32 %v70, %v228
    %v327 = vmul.f32 %v71, %v233
    %v328 = vmul.f32 %v72, %v233
    %v329 = vmul.f32 %v73, %v238
    %v330 = vmul.f32 %v74, %v238
    %v331 = vmul.f32 %v75, %v243
    %v332 = vmul.f32 %v76, %v243
    %v333 = vmul.f32 %v77, %v248
    %v334 = vmul.f32 %v78, %v248
    %v335 = vmul.f32 %v79, %v253
    %v336 = vmul.f32 %v80, %v253
    %v337 = vmul.f32 %v81, %v258
    %v338 = vmul.f32 %v82, %v258
    %v339 = vmul.f32 %v83, %v263
    %v340 = vmul.f32 %v84, %v263
    %v341 = vmul.f32 %v85, %v268
    %v342 = vmul.f32 %v86, %v268
    %v343 = vmul.f32 %v87, %v273
    %v344 = vmul.f32 %v88, %v273
    %v345 = vmul.f32 %v89, %v278
    %v346 = vmul.f32 %v90, %v278
    %v347 = vmul.f32 %v91, %v283
    %v348 = vmul.f32 %v92, %v283
    %v349 = vld [vmem:[%s2] sm:$0x3]
    %v351 = vlaneseq
    %v352 = vshrl.u32 %v351, 7
    %v353 = vsub.s32 0, %v352
    %v354 = vrot.slane %v349, %v353
    %v355 = vlaneseq
    %v356 = vshrl.u32 %v355, 7
    %v357 = vsub.s32 1, %v356
    %v358 = vrot.slane %v349, %v357
    %v361 = vmul.f32 %v285, %v354
    %v362 = vmul.f32 %v286, %v358
    %v363 = vmul.f32 %v287, %v354
    %v364 = vmul.f32 %v288, %v358
    %v365 = vmul.f32 %v289, %v354
    %v366 = vmul.f32 %v290, %v358
    %v367 = vmul.f32 %v291, %v354
    %v368 = vmul.f32 %v292, %v358
    %v369 = vmul.f32 %v293, %v354
    %v370 = vmul.f32 %v294, %v358
    %v371 = vmul.f32 %v295, %v354
    %v372 = vmul.f32 %v296, %v358
    %v373 = vmul.f32 %v297, %v354
    %v374 = vmul.f32 %v298, %v358
    %v375 = vmul.f32 %v299, %v354
    %v376 = vmul.f32 %v300, %v358
    %v377 = vmul.f32 %v301, %v354
    %v378 = vmul.f32 %v302, %v358
    %v379 = vmul.f32 %v303, %v354
    %v380 = vmul.f32 %v304, %v358
    %v381 = vmul.f32 %v305, %v354
    %v382 = vmul.f32 %v306, %v358
    %v383 = vmul.f32 %v307, %v354
    %v384 = vmul.f32 %v308, %v358
    %v385 = vmul.f32 %v309, %v354
    %v386 = vmul.f32 %v310, %v358
    %v387 = vmul.f32 %v311, %v354
    %v388 = vmul.f32 %v312, %v358
    %v389 = vmul.f32 %v313, %v354
    %v390 = vmul.f32 %v314, %v358
    %v391 = vmul.f32 %v315, %v354
    %v392 = vmul.f32 %v316, %v358
    %v393 = vmul.f32 %v317, %v354
    %v394 = vmul.f32 %v318, %v358
    %v395 = vmul.f32 %v319, %v354
    %v396 = vmul.f32 %v320, %v358
    %v397 = vmul.f32 %v321, %v354
    %v398 = vmul.f32 %v322, %v358
    %v399 = vmul.f32 %v323, %v354
    %v400 = vmul.f32 %v324, %v358
    %v401 = vmul.f32 %v325, %v354
    %v402 = vmul.f32 %v326, %v358
    %v403 = vmul.f32 %v327, %v354
    %v404 = vmul.f32 %v328, %v358
    %v405 = vmul.f32 %v329, %v354
    %v406 = vmul.f32 %v330, %v358
    %v407 = vmul.f32 %v331, %v354
    %v408 = vmul.f32 %v332, %v358
    %v409 = vmul.f32 %v333, %v354
    %v410 = vmul.f32 %v334, %v358
    %v411 = vmul.f32 %v335, %v354
    %v412 = vmul.f32 %v336, %v358
    %v413 = vmul.f32 %v337, %v354
    %v414 = vmul.f32 %v338, %v358
    %v415 = vmul.f32 %v339, %v354
    %v416 = vmul.f32 %v340, %v358
    %v417 = vmul.f32 %v341, %v354
    %v418 = vmul.f32 %v342, %v358
    %v419 = vmul.f32 %v343, %v354
    %v420 = vmul.f32 %v344, %v358
    %v421 = vmul.f32 %v345, %v354
    %v422 = vmul.f32 %v346, %v358
    %v423 = vmul.f32 %v347, %v354
    %v424 = vmul.f32 %v348, %v358
    %v425 = vpack.c.bf16 %v363, %v361
    %v426 = vpack.c.bf16 %v364, %v362
    %v427 = vpack.c.bf16 %v367, %v365
    %v428 = vpack.c.bf16 %v368, %v366
    %v429 = vpack.c.bf16 %v371, %v369
    %v430 = vpack.c.bf16 %v372, %v370
    %v431 = vpack.c.bf16 %v375, %v373
    %v432 = vpack.c.bf16 %v376, %v374
    %v433 = vpack.c.bf16 %v379, %v377
    %v434 = vpack.c.bf16 %v380, %v378
    %v435 = vpack.c.bf16 %v383, %v381
    %v436 = vpack.c.bf16 %v384, %v382
    %v437 = vpack.c.bf16 %v387, %v385
    %v438 = vpack.c.bf16 %v388, %v386
    %v439 = vpack.c.bf16 %v391, %v389
    %v440 = vpack.c.bf16 %v392, %v390
    %v441 = vpack.c.bf16 %v395, %v393
    %v442 = vpack.c.bf16 %v396, %v394
    %v443 = vpack.c.bf16 %v399, %v397
    %v444 = vpack.c.bf16 %v400, %v398
    %v445 = vpack.c.bf16 %v403, %v401
    %v446 = vpack.c.bf16 %v404, %v402
    %v447 = vpack.c.bf16 %v407, %v405
    %v448 = vpack.c.bf16 %v408, %v406
    %v449 = vpack.c.bf16 %v411, %v409
    %v450 = vpack.c.bf16 %v412, %v410
    %v451 = vpack.c.bf16 %v415, %v413
    %v452 = vpack.c.bf16 %v416, %v414
    %v453 = vpack.c.bf16 %v419, %v417
    %v454 = vpack.c.bf16 %v420, %v418
    %v455 = vpack.c.bf16 %v423, %v421
    %v456 = vpack.c.bf16 %v424, %v422
    %v489 = vunpack.c.l.b16 %v425
    %v490 = vunpack.c.l.b16 %v426
    %v491 = vunpack.c.h.b16 %v425
    %v492 = vunpack.c.h.b16 %v426
    %v493 = vunpack.c.l.b16 %v427
    %v494 = vunpack.c.l.b16 %v428
    %v495 = vunpack.c.h.b16 %v427
    %v496 = vunpack.c.h.b16 %v428
    %v497 = vunpack.c.l.b16 %v429
    %v498 = vunpack.c.l.b16 %v430
    %v499 = vunpack.c.h.b16 %v429
    %v500 = vunpack.c.h.b16 %v430
    %v501 = vunpack.c.l.b16 %v431
    %v502 = vunpack.c.l.b16 %v432
    %v503 = vunpack.c.h.b16 %v431
    %v504 = vunpack.c.h.b16 %v432
    %v505 = vunpack.c.l.b16 %v433
    %v506 = vunpack.c.l.b16 %v434
    %v507 = vunpack.c.h.b16 %v433
    %v508 = vunpack.c.h.b16 %v434
    %v509 = vunpack.c.l.b16 %v435
    %v510 = vunpack.c.l.b16 %v436
    %v511 = vunpack.c.h.b16 %v435
    %v512 = vunpack.c.h.b16 %v436
    %v513 = vunpack.c.l.b16 %v437
    %v514 = vunpack.c.l.b16 %v438
    %v515 = vunpack.c.h.b16 %v437
    %v516 = vunpack.c.h.b16 %v438
    %v517 = vunpack.c.l.b16 %v439
    %v518 = vunpack.c.l.b16 %v440
    %v519 = vunpack.c.h.b16 %v439
    %v520 = vunpack.c.h.b16 %v440
    %v521 = vunpack.c.l.b16 %v441
    %v522 = vunpack.c.l.b16 %v442
    %v523 = vunpack.c.h.b16 %v441
    %v524 = vunpack.c.h.b16 %v442
    %v525 = vunpack.c.l.b16 %v443
    %v526 = vunpack.c.l.b16 %v444
    %v527 = vunpack.c.h.b16 %v443
    %v528 = vunpack.c.h.b16 %v444
    %v529 = vunpack.c.l.b16 %v445
    %v530 = vunpack.c.l.b16 %v446
    %v531 = vunpack.c.h.b16 %v445
    %v532 = vunpack.c.h.b16 %v446
    %v533 = vunpack.c.l.b16 %v447
    %v534 = vunpack.c.l.b16 %v448
    %v535 = vunpack.c.h.b16 %v447
    %v536 = vunpack.c.h.b16 %v448
    %v537 = vunpack.c.l.b16 %v449
    %v538 = vunpack.c.l.b16 %v450
    %v539 = vunpack.c.h.b16 %v449
    %v540 = vunpack.c.h.b16 %v450
    %v541 = vunpack.c.l.b16 %v451
    %v542 = vunpack.c.l.b16 %v452
    %v543 = vunpack.c.h.b16 %v451
    %v544 = vunpack.c.h.b16 %v452
    %v545 = vunpack.c.l.b16 %v453
    %v546 = vunpack.c.l.b16 %v454
    %v547 = vunpack.c.h.b16 %v453
    %v548 = vunpack.c.h.b16 %v454
    %v549 = vunpack.c.l.b16 %v455
    %v550 = vunpack.c.l.b16 %v456
    %v551 = vunpack.c.h.b16 %v455
    %v552 = vunpack.c.h.b16 %v456
    %v553 = vpack.c.b16 %v490, %v489
    %v554 = vpack.c.b16 %v492, %v491
    %v555 = vpack.c.b16 %v494, %v493
    %v556 = vpack.c.b16 %v496, %v495
    %v557 = vpack.c.b16 %v498, %v497
    %v558 = vpack.c.b16 %v500, %v499
    %v559 = vpack.c.b16 %v502, %v501
    %v560 = vpack.c.b16 %v504, %v503
    %v561 = vpack.c.b16 %v506, %v505
    %v562 = vpack.c.b16 %v508, %v507
    %v563 = vpack.c.b16 %v510, %v509
    %v564 = vpack.c.b16 %v512, %v511
    %v565 = vpack.c.b16 %v514, %v513
    %v566 = vpack.c.b16 %v516, %v515
    %v567 = vpack.c.b16 %v518, %v517
    %v568 = vpack.c.b16 %v520, %v519
    %v569 = vpack.c.b16 %v522, %v521
    %v570 = vpack.c.b16 %v524, %v523
    %v571 = vpack.c.b16 %v526, %v525
    %v572 = vpack.c.b16 %v528, %v527
    %v573 = vpack.c.b16 %v530, %v529
    %v574 = vpack.c.b16 %v532, %v531
    %v575 = vpack.c.b16 %v534, %v533
    %v576 = vpack.c.b16 %v536, %v535
    %v577 = vpack.c.b16 %v538, %v537
    %v578 = vpack.c.b16 %v540, %v539
    %v579 = vpack.c.b16 %v542, %v541
    %v580 = vpack.c.b16 %v544, %v543
    %v581 = vpack.c.b16 %v546, %v545
    %v582 = vpack.c.b16 %v548, %v547
    %v583 = vpack.c.b16 %v550, %v549
    %v584 = vpack.c.b16 %v552, %v551
    %617 = vst [vmem:[#allocation5] sm:$0xff] %v553
    %618 = vst [vmem:[#allocation5 + $0x8] sm:$0xff] %v554
    %619 = vst [vmem:[#allocation5 + $0x10] sm:$0xff] %v555
    %620 = vst [vmem:[#allocation5 + $0x18] sm:$0xff] %v556
    %621 = vst [vmem:[#allocation5 + $0x20] sm:$0xff] %v557
    %622 = vst [vmem:[#allocation5 + $0x28] sm:$0xff] %v558
    %623 = vst [vmem:[#allocation5 + $0x30] sm:$0xff] %v559
    %624 = vst [vmem:[#allocation5 + $0x38] sm:$0xff] %v560
    %625 = vst [vmem:[#allocation5 + $0x40] sm:$0xff] %v561
    %626 = vst [vmem:[#allocation5 + $0x48] sm:$0xff] %v562
    %627 = vst [vmem:[#allocation5 + $0x50] sm:$0xff] %v563
    %628 = vst [vmem:[#allocation5 + $0x58] sm:$0xff] %v564
    %629 = vst [vmem:[#allocation5 + $0x60] sm:$0xff] %v565
    %630 = vst [vmem:[#allocation5 + $0x68] sm:$0xff] %v566
    %631 = vst [vmem:[#allocation5 + $0x70] sm:$0xff] %v567
    %632 = vst [vmem:[#allocation5 + $0x78] sm:$0xff] %v568
    %633 = vst [vmem:[#allocation5 + $0x80] sm:$0xff] %v569
    %634 = vst [vmem:[#allocation5 + $0x88] sm:$0xff] %v570
    %635 = vst [vmem:[#allocation5 + $0x90] sm:$0xff] %v571
    %636 = vst [vmem:[#allocation5 + $0x98] sm:$0xff] %v572
    %637 = vst [vmem:[#allocation5 + $0xa0] sm:$0xff] %v573
    %638 = vst [vmem:[#allocation5 + $0xa8] sm:$0xff] %v574
    %639 = vst [vmem:[#allocation5 + $0xb0] sm:$0xff] %v575
    %640 = vst [vmem:[#allocation5 + $0xb8] sm:$0xff] %v576
    %641 = vst [vmem:[#allocation5 + $0xc0] sm:$0xff] %v577
    %642 = vst [vmem:[#allocation5 + $0xc8] sm:$0xff] %v578
    %643 = vst [vmem:[#allocation5 + $0xd0] sm:$0xff] %v579
    %644 = vst [vmem:[#allocation5 + $0xd8] sm:$0xff] %v580
    %645 = vst [vmem:[#allocation5 + $0xe0] sm:$0xff] %v581
    %646 = vst [vmem:[#allocation5 + $0xe8] sm:$0xff] %v582
    %647 = vst [vmem:[#allocation5 + $0xf0] sm:$0xff] %v583
    %648 = vst [vmem:[#allocation5 + $0xf8] sm:$0xff] %v584
    // Predicated region
    $region18: #{tpu_custom_call.1} parent=1 // pred_check
      _
    $region19: #{tpu_custom_call.1} parent=1 // pred_check_branch
      %650 = sbr.rel (0) target = $region21
    $region20: #{tpu_custom_call.1} parent=1 // pred_region
      %s652 = ssub.s32 4096, 4096
      %653 = vsyncadd [#allocation4], %s652
      %s654 = sshll.u32 [#allocation5], 4
      %s655 = int_to_ptr.vmem [resolvable:$true] %s654
      %660 = dma.vmem_to_hbm [thread:$0]  %s655, 4096, %s3, [#allocation4], 128, 128, 8
    $region21: #{tpu_custom_call.1} parent=1 // pred_fallthru
      _
    // Predicated region
    $region22: #{tpu_custom_call.1} parent=1 // pred_check
      _
    $region23: #{tpu_custom_call.1} parent=1 // pred_check_branch
      %662 = sbr.rel (0) target = $region25
    $region24: #{tpu_custom_call.1} parent=1 // pred_region
      %663 = dma.done [#allocation4], 4096
    $region25: #{tpu_custom_call.1} parent=1 // pred_fallthru
      _
    %664 = vsyncpa [#allocation3], 1
    %665 = vsyncpa [#allocation4], 1

</llo_original>
